<compile_context>
chip_gen: v5e
topology: v5e:2x2
jax: 0.10.0
libtpu: 0.0.40
codegen_flags: <defaults>
</compile_context>

<pallas_src>
import math

import jax
import jax.numpy as jnp
from jax.experimental import pallas as pl
from jax.experimental.pallas import tpu as pltpu


def _dp_vi_kernel(w_ref, cent_ref, mix_ref, xT_ref, logpiT_ref,
                  phiT_ref, likcol_ref):
    """One N-block of the DP-VI forward (everything transposed: N on lanes).

    w_ref:      [T, 2D]  fused Gaussian weights  [-1/(2s^2) | mu/s^2]
    cent_ref:   [T, 1]   per-component constant  (log-pdf const + entropy)
    mix_ref:    [T, 1]   global mix weights from get_phi (full-batch statistic)
    xT_ref:     [D, TN]  instance block (transposed)
    logpiT_ref: [T, TN]  log stick-breaking weights (transposed)
    phiT_ref:   [T, TN]  out: softmax responsibilities (transposed)
    likcol_ref: [1, TN]  out: per-instance sum_t phi * (mix * kl_gaussian)
    """
    xb = xT_ref[...]                                        # [D, TN]
    feats = jnp.concatenate([xb * xb, xb], axis=0)          # [2D, TN]

    # kl_gaussian = log_pdf + entropy via one MXU matmul + folded constant.
    kl_g = (jnp.dot(w_ref[...], feats,
                    preferred_element_type=jnp.float32)
            + cent_ref[...])                                # [T, TN] f32

    mix = mix_ref[...]                                      # [T, 1]
    kl = mix * kl_g + (1.0 - mix) * logpiT_ref[...]         # [T, TN]

    # softmax over components (axis 0 == sublanes; T fits a single vreg stack)
    kl_max = jnp.max(kl, axis=0, keepdims=True)             # [1, TN]
    e = jnp.exp(kl - kl_max)
    inv_den = pl.reciprocal(jnp.sum(e, axis=0, keepdims=True), approx=True)
    phi = e * inv_den                                       # [T, TN]
    phiT_ref[...] = phi

    # per-instance likelihood contribution: sum_t phi * (mix * kl_gaussian)
    likcol_ref[...] = jnp.sum(phi * (mix * kl_g), axis=0, keepdims=True)


def dirichlet_process_vi_forward(x, mu, rho, beta, *, block_n=128,
                                 use_bf16_matmul=False):
    """JAX/Pallas equivalent of DirichletProcess_VI.forward.

    x:    [1, N, D]   (leading singleton matches the torch .squeeze(0))
    mu:   [T, D]
    rho:  [T, D]
    beta: [N, T]      pre-sampled Beta(1, eta) draws (replaces scipy beta.rvs)

    Returns (likelihood_scalar, phi_new[N, T]).
    """
    x = jnp.squeeze(x, axis=0).astype(jnp.float32)          # [N, D]
    n, d = x.shape
    t = mu.shape[0]
    mu = mu.astype(jnp.float32)
    rho = rho.astype(jnp.float32)
    beta = beta.astype(jnp.float32)

    # ---- Gaussian params folded into one fused weight + one constant ----
    sigma = jnp.log1p(jnp.exp(rho))                         # softplus, [T, D]
    inv_var = 1.0 / (sigma * sigma)                         # [T, D]
    w_fused = jnp.concatenate([-0.5 * inv_var, mu * inv_var], axis=1)  # [T, 2D]
    log_sigma_sum = jnp.sum(jnp.log(sigma), axis=1)         # [T]
    log_pdf_const = (-d * math.log(math.sqrt(2.0 * math.pi))
                     - log_sigma_sum
                     - 0.5 * jnp.sum(mu * mu * inv_var, axis=1))        # [T]
    entropy = d / 2.0 * (math.log(2.0 * math.pi) + 1.0) + log_sigma_sum  # [T]
    cent = (log_pdf_const + entropy)[:, None].astype(jnp.float32)        # [T,1]

    # ---- stick breaking in log space (avoids cumprod underflow -> -inf) ----
    log_beta = jnp.log(beta)
    cum = jnp.cumsum(jnp.log1p(-beta), axis=-1)
    shifted = jnp.concatenate(
        [jnp.zeros((n, 1), jnp.float32), cum[:, :-1]], axis=-1)
    log_pi = log_beta + shifted                             # [N, T]

    # ---- global mix weights (get_phi's N_t_* are full-batch column sums) ----
    # sum_n kl_gaussian[n, t] == (sum_n feats[n]) @ W[t, :] + N * cent[t]
    feat_sum = jnp.concatenate(
        [jnp.sum(x * x, axis=0), jnp.sum(x, axis=0)])       # [2D]
    n_t_gaussian = w_fused @ feat_sum + n * cent[:, 0]      # [T]
    n_t_pi = jnp.sum(log_pi, axis=0)                        # [T]
    mix = (n_t_pi / (n_t_gaussian + n_t_pi))[:, None].astype(jnp.float32)

    # ---- transpose + pad so N sits on the (128-wide) lane axis ----
    n_blocks = -(-n // block_n)
    n_pad = n_blocks * block_n
    xT = jnp.pad(jnp.transpose(x), ((0, 0), (0, n_pad - n)))            # [D, n_pad]
    logpiT = jnp.pad(jnp.transpose(log_pi), ((0, 0), (0, n_pad - n)))   # [T, n_pad]

    if use_bf16_matmul:   # v6e/v7x native MXU path; accumulation stays f32
        xT_in = xT.astype(jnp.bfloat16)
        w_in = w_fused.astype(jnp.bfloat16)
    else:                 # default: f32 operands (exact-ish, v5e-friendly)
        xT_in = xT
        w_in = w_fused

    # VMEM per step (f32, D=128, T=8, block_n=128): ~80 KB * 2 buffers — tiny.
    # For large N/D, raise block_n (keep it a multiple of 128; budget for
    # v7x's 64 MiB VMEM) and optionally set vmem_limit_bytes.
    phiT, likcol = pl.pallas_call(
        _dp_vi_kernel,
        out_shape=(
            jax.ShapeDtypeStruct((t, n_pad), jnp.float32),  # phi (transposed)
            jax.ShapeDtypeStruct((1, n_pad), jnp.float32),  # per-instance lik
        ),
        grid=(n_blocks,),
        in_specs=[
            pl.BlockSpec((t, 2 * d), lambda i: (0, 0)),     # fused weights
            pl.BlockSpec((t, 1), lambda i: (0, 0)),         # folded constant
            pl.BlockSpec((t, 1), lambda i: (0, 0)),         # mix
            pl.BlockSpec((d, block_n), lambda i: (0, i)),   # x^T block
            pl.BlockSpec((t, block_n), lambda i: (0, i)),   # log_pi^T block
        ],
        out_specs=(
            pl.BlockSpec((t, block_n), lambda i: (0, i)),
            pl.BlockSpec((1, block_n), lambda i: (0, i)),
        ),
        compiler_params=pltpu.CompilerParams(
            dimension_semantics=("parallel",)),
    )(w_in, cent, mix, xT_in, logpiT)

    likelihood = jnp.sum(likcol[0, :n]) / n                 # mean over instances
    phi_new = jnp.transpose(phiT[:, :n])                    # [N, T]
    return likelihood, phi_new


def _reference_forward(x, mu, rho, beta):
    """Pure-JAX transcription of the PyTorch module (verification only)."""
    x = jnp.squeeze(x, axis=0).astype(jnp.float32)
    n, d = x.shape
    sigma = jnp.log1p(jnp.exp(rho.astype(jnp.float32)))
    diff = x[:, None, :] - mu[None, :, :]
    log_pdf = jnp.sum(
        -math.log(math.sqrt(2.0 * math.pi)) - jnp.log(sigma)[None]
        - diff * diff / (2.0 * sigma * sigma)[None], axis=-1)           # [N, T]
    ent = (d / 2.0 * (math.log(2.0 * math.pi) + 1.0)
           + jnp.sum(jnp.log(sigma), axis=1))[None, :]                  # [1, T]
    beta1m_cumprod = jnp.cumprod(1.0 - beta, axis=-1)
    ones = jnp.ones((n, 1), beta.dtype)
    pi = (jnp.concatenate([beta, ones], axis=-1)
          * jnp.concatenate([ones, beta1m_cumprod], axis=-1))[:, :-1]
    log_pi = jnp.log(pi)
    kl_gaussian = log_pdf + ent
    n_t_g = kl_gaussian.sum(0, keepdims=True)
    n_t_p = log_pi.sum(0, keepdims=True)
    mix = n_t_p / (n_t_g + n_t_p)
    kl = mix * kl_gaussian + (1.0 - mix) * log_pi
    phi = jax.nn.softmax(kl, axis=1)
    likelihood = (phi * (mix * kl_gaussian)).sum(1).mean(0)
    return likelihood, phi


if __name__ == "__main__":
    key = jax.random.PRNGKey(0)
    k_x, k_mu, k_rho, k_beta = jax.random.split(key, 4)

    N, D, T = 16, 128, 8          # instances, feature dim, truncation level
    eta = 1.5

    # module input: x of shape [1, N, D] (squeezed inside forward)
    x = jax.random.normal(k_x, (1, N, D), dtype=jnp.float32)

    # deterministic "parameter init": uniform(-0.5, 0.5) as in __init__
    mu = jax.random.uniform(k_mu, (T, D), jnp.float32, minval=-0.5, maxval=0.5)
    rho = jax.random.uniform(k_rho, (T, D), jnp.float32, minval=-0.5, maxval=0.5)

    # sample_beta: Beta(gamma_1=1, gamma_2=eta) draws of shape [N, T]
    beta = jax.random.beta(k_beta, 1.0, eta, (N, T)).astype(jnp.float32)

    likelihood, phi_new = dirichlet_process_vi_forward(x, mu, rho, beta)
    jax.block_until_ready((likelihood, phi_new))

    # sanity-check against a pure-JAX transcription of the torch module
    ref_lik, ref_phi = _reference_forward(x, mu, rho, beta)
    assert bool(jnp.isfinite(likelihood)), "non-finite likelihood"
    assert jnp.allclose(likelihood, ref_lik, rtol=5e-2, atol=5e-2), \
        (float(likelihood), float(ref_lik))
    assert jnp.allclose(phi_new, ref_phi, rtol=5e-2, atol=1e-2), \
        float(jnp.max(jnp.abs(phi_new - ref_phi)))

    print("KERNEL_OK")
</pallas_src>

<mosaic_0001>
module attributes {stable_mosaic.version = 11 : i64} {
  func.func @_dp_vi_kernel(%arg0: i32, %arg1: memref<8x256xf32, #tpu.memory_space<vmem>>, %arg2: memref<8x1xf32, #tpu.memory_space<vmem>>, %arg3: memref<8x1xf32, #tpu.memory_space<vmem>>, %arg4: memref<128x128xf32, #tpu.memory_space<vmem>>, %arg5: memref<8x128xf32, #tpu.memory_space<vmem>>, %arg6: memref<8x128xf32, #tpu.memory_space<vmem>>, %arg7: memref<1x128xf32, #tpu.memory_space<vmem>>) attributes {dimension_semantics = [#tpu.dimension_semantics<parallel>], iteration_bounds = array<i64: 1>, scalar_prefetch = 0 : i64, scratch_operands = 0 : i64, tpu.core_type = #tpu.core_type<tc>, window_params = [{pipeline_mode = #tpu.pipeline_mode<synchronous>, transform_indices = @transform_0, window_bounds = array<i64: 8, 256>}, {pipeline_mode = #tpu.pipeline_mode<synchronous>, transform_indices = @transform_1, window_bounds = array<i64: 8, 1>}, {pipeline_mode = #tpu.pipeline_mode<synchronous>, transform_indices = @transform_2, window_bounds = array<i64: 8, 1>}, {transform_indices = @transform_3, window_bounds = array<i64: 128, 128>}, {transform_indices = @transform_4, window_bounds = array<i64: 8, 128>}, {transform_indices = @transform_5, window_bounds = array<i64: 8, 128>}, {transform_indices = @transform_6, window_bounds = array<i64: 1, 128>}]} {
    %c0 = arith.constant 0 : index
    %c0_0 = arith.constant 0 : index
    %0 = vector.load %arg4[%c0, %c0_0] : memref<128x128xf32, #tpu.memory_space<vmem>>, vector<128x128xf32>
    %1 = arith.mulf %0, %0 : vector<128x128xf32>
    %2 = tpu.concatenate %1, %0 in 0 : vector<128x128xf32>, vector<128x128xf32> -> vector<256x128xf32>
    %c0_1 = arith.constant 0 : index
    %c0_2 = arith.constant 0 : index
    %3 = vector.load %arg1[%c0_1, %c0_2] : memref<8x256xf32, #tpu.memory_space<vmem>>, vector<8x256xf32>
    %cst = arith.constant dense<0.000000e+00> : vector<8x128xf32>
    %4 = tpu.matmul %3, %2, %cst {dimension_numbers = #tpu.dot_dimension_numbers<[1], [0], [0], [1], [0, 0, 1, 1], [], []>} : vector<8x256xf32>, vector<256x128xf32>, vector<8x128xf32> -> vector<8x128xf32>
    %c0_3 = arith.constant 0 : index
    %c0_4 = arith.constant 0 : index
    %5 = vector.load %arg2[%c0_3, %c0_4] : memref<8x1xf32, #tpu.memory_space<vmem>>, vector<8x1xf32>
    %6 = vector.broadcast %5 : vector<8x1xf32> to vector<8x128xf32>
    %7 = arith.addf %4, %6 : vector<8x128xf32>
    %c0_5 = arith.constant 0 : index
    %c0_6 = arith.constant 0 : index
    %8 = vector.load %arg3[%c0_5, %c0_6] : memref<8x1xf32, #tpu.memory_space<vmem>>, vector<8x1xf32>
    %9 = vector.broadcast %8 : vector<8x1xf32> to vector<8x128xf32>
    %10 = arith.mulf %9, %7 : vector<8x128xf32>
    %cst_7 = arith.constant 1.000000e+00 : f32
    %11 = vector.broadcast %cst_7 : f32 to vector<8x1xf32>
    %12 = arith.subf %11, %8 : vector<8x1xf32>
    %c0_8 = arith.constant 0 : index
    %c0_9 = arith.constant 0 : index
    %13 = vector.load %arg5[%c0_8, %c0_9] : memref<8x128xf32, #tpu.memory_space<vmem>>, vector<8x128xf32>
    %14 = vector.broadcast %12 : vector<8x1xf32> to vector<8x128xf32>
    %15 = arith.mulf %14, %13 : vector<8x128xf32>
    %16 = arith.addf %10, %15 : vector<8x128xf32>
    %cst_10 = arith.constant dense<0xFF800000> : vector<128xf32>
    %17 = vector.multi_reduction <maximumf>, %16, %cst_10 [0] : vector<8x128xf32> to vector<128xf32>
    %18 = vector.shape_cast %17 : vector<128xf32> to vector<1x128xf32>
    %19 = vector.broadcast %18 : vector<1x128xf32> to vector<8x128xf32>
    %20 = arith.subf %16, %19 : vector<8x128xf32>
    %21 = math.exp %20 : vector<8x128xf32>
    %cst_11 = arith.constant dense<0.000000e+00> : vector<128xf32>
    %22 = vector.multi_reduction <add>, %21, %cst_11 [0] : vector<8x128xf32> to vector<128xf32>
    %23 = vector.shape_cast %22 : vector<128xf32> to vector<1x128xf32>
    %24 = tpu.reciprocal %23 {approx = true} : vector<1x128xf32> -> vector<1x128xf32>
    %25 = vector.broadcast %24 : vector<1x128xf32> to vector<8x128xf32>
    %26 = arith.mulf %21, %25 : vector<8x128xf32>
    %c0_12 = arith.constant 0 : index
    %c0_13 = arith.constant 0 : index
    %27 = vector.load %arg6[%c0_12, %c0_13] : memref<8x128xf32, #tpu.memory_space<vmem>>, vector<8x128xf32>
    tpu.vector_store %arg6[%c0_12, %c0_13], %26 {strides = array<i32>} : memref<8x128xf32, #tpu.memory_space<vmem>>, vector<8x128xf32>,
    %28 = vector.broadcast %8 : vector<8x1xf32> to vector<8x128xf32>
    %29 = arith.mulf %28, %7 : vector<8x128xf32>
    %30 = arith.mulf %26, %29 : vector<8x128xf32>
    %cst_14 = arith.constant dense<0.000000e+00> : vector<128xf32>
    %31 = vector.multi_reduction <add>, %30, %cst_14 [0] : vector<8x128xf32> to vector<128xf32>
    %32 = vector.shape_cast %31 : vector<128xf32> to vector<1x128xf32>
    %c0_15 = arith.constant 0 : index
    %c0_16 = arith.constant 0 : index
    %33 = vector.load %arg7[%c0_15, %c0_16] : memref<1x128xf32, #tpu.memory_space<vmem>>, vector<1x128xf32>
    tpu.vector_store %arg7[%c0_15, %c0_16], %32 {strides = array<i32>} : memref<1x128xf32, #tpu.memory_space<vmem>>, vector<1x128xf32>,
    return
  }
  func.func @transform_0(%arg0: i32) -> (i32, i32) {
    %c0_i32 = arith.constant 0 : i32
    %c0_i32_0 = arith.constant 0 : i32
    %c0_i32_1 = arith.constant 0 : i32
    return %c0_i32, %c0_i32_0 : i32, i32
  }
  func.func @transform_1(%arg0: i32) -> (i32, i32) {
    %c0_i32 = arith.constant 0 : i32
    %c0_i32_0 = arith.constant 0 : i32
    %c0_i32_1 = arith.constant 0 : i32
    return %c0_i32, %c0_i32_0 : i32, i32
  }
  func.func @transform_2(%arg0: i32) -> (i32, i32) {
    %c0_i32 = arith.constant 0 : i32
    %c0_i32_0 = arith.constant 0 : i32
    %c0_i32_1 = arith.constant 0 : i32
    return %c0_i32, %c0_i32_0 : i32, i32
  }
  func.func @transform_3(%arg0: i32) -> (i32, i32) {
    %c0_i32 = arith.constant 0 : i32
    %c0_i32_0 = arith.constant 0 : i32
    return %c0_i32, %arg0 : i32, i32
  }
  func.func @transform_4(%arg0: i32) -> (i32, i32) {
    %c0_i32 = arith.constant 0 : i32
    %c0_i32_0 = arith.constant 0 : i32
    return %c0_i32, %arg0 : i32, i32
  }
  func.func @transform_5(%arg0: i32) -> (i32, i32) {
    %c0_i32 = arith.constant 0 : i32
    %c0_i32_0 = arith.constant 0 : i32
    return %c0_i32, %arg0 : i32, i32
  }
  func.func @transform_6(%arg0: i32) -> (i32, i32) {
    %c0_i32 = arith.constant 0 : i32
    %c0_i32_0 = arith.constant 0 : i32
    return %c0_i32, %arg0 : i32, i32
  }
}

</mosaic_0001>

<llo_original>
// kernel: tpu_custom_call.1
$region0: #{tpu_custom_call.1}
  #allocation0 [shape = 'u32[]', space=smem, size = 0x4, offset = 0x4, fixed_abs, tag = 'smem constant byte address 0x4 - core index']
  #allocation1 [shape = 'u32[72,128]{1,0:T(1,128)}', space=vmem, size = 0x9000, scoped, tag = 'internal scratch']
  %s0 = inlined_call_operand.vmem [shape: f32[8,256], index: 0, kind: input, shape index: {}]
  %s1 = inlined_call_operand.vmem [shape: f32[8,1], index: 1, kind: input, shape index: {}]
  %s2 = inlined_call_operand.vmem [shape: f32[8,1], index: 2, kind: input, shape index: {}]
  %s3 = inlined_call_operand.hbm [shape: f32[128,128], index: 3, kind: input, shape index: {}]
  %s4 = inlined_call_operand.hbm [shape: f32[8,128], index: 4, kind: input, shape index: {}]
  %s5 = inlined_call_operand.hbm [shape: f32[8,128], index: 5, kind: output, shape index: {0}]
  %s6 = inlined_call_operand.hbm [shape: f32[1,128], index: 6, kind: output, shape index: {1}]
  %7 = xla_tuple %s5, %s6
  %s8 = sld [smem:[#allocation0]]
  $region46: #{tpu_custom_call.1} parent=0
    _
  %s10 = ssub.s32 1, %s8
  %s11 = scalar_select 0, %s10, %s8
  $region1: #{tpu_custom_call.1} parent=0
    #allocation2 [shape = 'u8[65536]{0}', space=vmem, size = 0x10000, scoped, tag = 'input window, operand 3, single buffered']
    #allocation3 [shape = 's32[1]{0}', space=sflag, size = 0x4, scoped, tag = 'scoped memory for tpu_custom_call.1']
    #allocation4 [shape = 's32[1]{0}', space=sflag, size = 0x4, scoped, tag = 'scoped memory for tpu_custom_call.1']
    #allocation5 [shape = 'u8[4096]{0}', space=vmem, size = 0x1000, scoped, tag = 'input window, operand 4, single buffered']
    #allocation6 [shape = 's32[1]{0}', space=sflag, size = 0x4, scoped, tag = 'scoped memory for tpu_custom_call.1']
    #allocation7 [shape = 'u8[4096]{0}', space=vmem, size = 0x1000, scoped, tag = 'output window, operand 0, single buffered']
    #allocation8 [shape = 'u8[512]{0}', space=vmem, size = 0x400, scoped, tag = 'output window, operand 1, single buffered']
    #allocation9 [shape = 's32[1]{0}', space=sflag, size = 0x4, scoped, tag = 'scoped memory for tpu_custom_call.1']
    %12 = vsyncpa [#allocation3], 0
    %13 = vsyncpa [#allocation6], 0
    %14 = vsyncpa [#allocation4], 0
    %15 = vsyncpa [#allocation9], 0
    // Predicated region
    $region2: #{tpu_custom_call.1} parent=1 // pred_check
      _
    $region3: #{tpu_custom_call.1} parent=1 // pred_check_branch
      %17 = sbr.rel (0) target = $region5
    $region4: #{tpu_custom_call.1} parent=1 // pred_region
      _
    $region5: #{tpu_custom_call.1} parent=1 // pred_fallthru
      _
    // Predicated region
    $region6: #{tpu_custom_call.1} parent=1 // pred_check
      _
    $region7: #{tpu_custom_call.1} parent=1 // pred_check_branch
      %19 = sbr.rel (0) target = $region9
    $region8: #{tpu_custom_call.1} parent=1 // pred_region
      _
    $region9: #{tpu_custom_call.1} parent=1 // pred_fallthru
      _
    // Predicated region
    $region10: #{tpu_custom_call.1} parent=1 // pred_check
      _
    $region11: #{tpu_custom_call.1} parent=1 // pred_check_branch
      %21 = sbr.rel (0) target = $region13
    $region12: #{tpu_custom_call.1} parent=1 // pred_region
      _
    $region13: #{tpu_custom_call.1} parent=1 // pred_fallthru
      _
    // Predicated region
    $region14: #{tpu_custom_call.1} parent=1 // pred_check
      _
    $region15: #{tpu_custom_call.1} parent=1 // pred_check_branch
      %23 = sbr.rel (0) target = $region17
    $region16: #{tpu_custom_call.1} parent=1 // pred_region
      %25 = vsyncadd [#allocation3], 0
      %s26 = sshll.u32 %s3, 4
      %s27 = int_to_ptr.hbm [resolvable:$true] %s26
      %s28 = sshll.u32 [#allocation2], 4
      %s29 = int_to_ptr.vmem [resolvable:$true] %s28
      %34 = dma.hbm_to_vmem [thread:$0]  %s27, 2048, %s29, [#allocation3], 128, 128, 8
    $region17: #{tpu_custom_call.1} parent=1 // pred_fallthru
      _
    // Predicated region
    $region18: #{tpu_custom_call.1} parent=1 // pred_check
      _
    $region19: #{tpu_custom_call.1} parent=1 // pred_check_branch
      %36 = sbr.rel (0) target = $region21
    $region20: #{tpu_custom_call.1} parent=1 // pred_region
      %38 = vsyncadd [#allocation6], 0
      %s40 = sshll.u32 %s4, 4
      %s41 = int_to_ptr.hbm [resolvable:$true] %s40
      %s42 = sshll.u32 [#allocation5], 4
      %s43 = int_to_ptr.vmem [resolvable:$true] %s42
      %45 = dma.hbm_to_vmem [thread:$0]  %s41, 128, %s43, [#allocation6]
    $region21: #{tpu_custom_call.1} parent=1 // pred_fallthru
      _
    // Predicated region
    $region22: #{tpu_custom_call.1} parent=1 // pred_check
      _
    $region23: #{tpu_custom_call.1} parent=1 // pred_check_branch
      %47 = sbr.rel (0) target = $region25
    $region24: #{tpu_custom_call.1} parent=1 // pred_region
      %49 = dma.done [#allocation3], 2048
    $region25: #{tpu_custom_call.1} parent=1 // pred_fallthru
      _
    // Predicated region
    $region26: #{tpu_custom_call.1} parent=1 // pred_check
      _
    $region27: #{tpu_custom_call.1} parent=1 // pred_check_branch
      %51 = sbr.rel (0) target = $region29
    $region28: #{tpu_custom_call.1} parent=1 // pred_region
      %53 = dma.done [#allocation6], 128
    $region29: #{tpu_custom_call.1} parent=1 // pred_fallthru
      _
    %v54 = vld [vmem:[#allocation2] sm:$0xff]
    %v55 = vld [vmem:[#allocation2 + $0x8] sm:$0xff]
    %v56 = vld [vmem:[#allocation2 + $0x10] sm:$0xff]
    %v57 = vld [vmem:[#allocation2 + $0x18] sm:$0xff]
    %v58 = vld [vmem:[#allocation2 + $0x20] sm:$0xff]
    %v59 = vld [vmem:[#allocation2 + $0x28] sm:$0xff]
    %v60 = vld [vmem:[#allocation2 + $0x30] sm:$0xff]
    %v61 = vld [vmem:[#allocation2 + $0x38] sm:$0xff]
    %v62 = vld [vmem:[#allocation2 + $0x40] sm:$0xff]
    %v63 = vld [vmem:[#allocation2 + $0x48] sm:$0xff]
    %v64 = vld [vmem:[#allocation2 + $0x50] sm:$0xff]
    %v65 = vld [vmem:[#allocation2 + $0x58] sm:$0xff]
    %v66 = vld [vmem:[#allocation2 + $0x60] sm:$0xff]
    %v67 = vld [vmem:[#allocation2 + $0x68] sm:$0xff]
    %v68 = vld [vmem:[#allocation2 + $0x70] sm:$0xff]
    %v69 = vld [vmem:[#allocation2 + $0x78] sm:$0xff]
    %v70 = vmul.f32 %v54, %v54
    %v71 = vmul.f32 %v55, %v55
    %v72 = vmul.f32 %v56, %v56
    %v73 = vmul.f32 %v57, %v57
    %v74 = vmul.f32 %v58, %v58
    %v75 = vmul.f32 %v59, %v59
    %v76 = vmul.f32 %v60, %v60
    %v77 = vmul.f32 %v61, %v61
    %v78 = vmul.f32 %v62, %v62
    %v79 = vmul.f32 %v63, %v63
    %v80 = vmul.f32 %v64, %v64
    %v81 = vmul.f32 %v65, %v65
    %v82 = vmul.f32 %v66, %v66
    %v83 = vmul.f32 %v67, %v67
    %v84 = vmul.f32 %v68, %v68
    %v85 = vmul.f32 %v69, %v69
    %v86 = vld [vmem:[%s0] sm:$0xff]
    %v87 = vld [vmem:[%s0 + $0x8] sm:$0xff]
    %v88 = vld [vmem:[%s1] sm:$0xff]
    %90 = vset.pattern.permute.xlu0 0
    %91 = vperm.xlu0 %90, %v88
    %v92 = vpop.permute.xlu0 %91
    %94 = vmatpush.msra.mxu0 %v85
    %95 = vmatpush.msra.mxu0 %v84
    %96 = vmatpush.msra.mxu0 %v83
    %97 = vmatpush.msra.mxu0 %v82
    %98 = vmatpush.msra.mxu0 %v81
    %99 = vmatpush.msra.mxu0 %v80
    %100 = vmatpush.msra.mxu0 %v79
    %101 = vmatpush.msra.mxu0 %v78
    %102 = vmatpush.msra.mxu0 %v77
    %103 = vmatpush.msra.mxu0 %v76
    %104 = vmatpush.msra.mxu0 %v75
    %105 = vmatpush.msra.mxu0 %v74
    %106 = vmatpush.msra.mxu0 %v73
    %107 = vmatpush.msra.mxu0 %v72
    %108 = vmatpush.msra.mxu0 %v71
    %109 = vmatpush.msra.mxu0 %v70
    %110 = vmatmul.f32.gmra.mxu0 %v86
    %v111 = vpop.f32.mrf.mxu0
    %v112 = vadd.f32 %v92, %v111
    %113 = vdwg.mxu0
    %114 = vmatpush.msra.mxu0 %v69
    %115 = vmatpush.msra.mxu0 %v68
    %116 = vmatpush.msra.mxu0 %v67
    %117 = vmatpush.msra.mxu0 %v66
    %118 = vmatpush.msra.mxu0 %v65
    %119 = vmatpush.msra.mxu0 %v64
    %120 = vmatpush.msra.mxu0 %v63
    %121 = vmatpush.msra.mxu0 %v62
    %122 = vmatpush.msra.mxu0 %v61
    %123 = vmatpush.msra.mxu0 %v60
    %124 = vmatpush.msra.mxu0 %v59
    %125 = vmatpush.msra.mxu0 %v58
    %126 = vmatpush.msra.mxu0 %v57
    %127 = vmatpush.msra.mxu0 %v56
    %128 = vmatpush.msra.mxu0 %v55
    %129 = vmatpush.msra.mxu0 %v54
    %130 = vmatmul.f32.gmra.mxu0 %v87
    %v131 = vpop.f32.mrf.mxu0
    %v132 = vadd.f32 %v112, %v131
    %133 = vdwg.mxu0
    %v134 = vld [vmem:[%s2] sm:$0xff]
    %136 = vset.pattern.permute.xlu0 0
    %137 = vperm.xlu0 %136, %v134
    %v138 = vpop.permute.xlu0 %137
    %v140 = vmul.f32 %v138, %v132
    %v141 = vsub.f32 1.0, %v134
    %v142 = vld [vmem:[#allocation5] sm:$0xff]
    %144 = vset.pattern.permute.xlu0 0
    %145 = vperm.xlu0 %144, %v141
    %v146 = vpop.permute.xlu0 %145
    %v148 = vmul.f32 %v146, %v142
    %v149 = vadd.f32 %v140, %v148
    %v150 = vrot.slane %v149, 4
    %v151 = vmax.f32 %v149, %v150
    %v152 = vrot.slane %v151, 2
    %v153 = vmax.f32 %v151, %v152
    %v154 = vrot.slane %v153, 1
    %v155 = vmax.f32 %v153, %v154
    %v156 = vsub.f32 %v149, %v155
    %v157 = vmul.f32 %v156, 1.442695
    %v158 = vpow.pop %v157
    %v159 = vrot.slane %v158, 4
    %v160 = vadd.f32 %v158, %v159
    %v161 = vrot.slane %v160, 2
    %v162 = vadd.f32 %v160, %v161
    %v163 = vrot.slane %v162, 1
    %v164 = vadd.f32 %v162, %v163
    %v165 = vrcp.pop %v164
    %v166 = vmul.f32 %v158, %v165
    %167 = vst [vmem:[#allocation7] sm:$0xff] %v166
    %v168 = vmul.f32 %v166, %v140
    %v169 = vrot.slane %v168, 4
    %v170 = vadd.f32 %v168, %v169
    %v171 = vrot.slane %v170, 2
    %v172 = vadd.f32 %v170, %v171
    %v173 = vrot.slane %v172, 1
    %v174 = vadd.f32 %v172, %v173
    %175 = vst [vmem:[#allocation8] sm:$0x1] %v174
    // Predicated region
    $region30: #{tpu_custom_call.1} parent=1 // pred_check
      _
    $region31: #{tpu_custom_call.1} parent=1 // pred_check_branch
      %177 = sbr.rel (0) target = $region33
    $region32: #{tpu_custom_call.1} parent=1 // pred_region
      %179 = vsyncadd [#allocation4], 0
      %s181 = sshll.u32 [#allocation7], 4
      %s182 = int_to_ptr.vmem [resolvable:$true] %s181
      %s183 = sshll.u32 %s5, 4
      %s184 = int_to_ptr.hbm [resolvable:$true] %s183
      %186 = dma.vmem_to_hbm [thread:$0]  %s182, 128, %s184, [#allocation4]
    $region33: #{tpu_custom_call.1} parent=1 // pred_fallthru
      _
    // Predicated region
    $region34: #{tpu_custom_call.1} parent=1 // pred_check
      _
    $region35: #{tpu_custom_call.1} parent=1 // pred_check_branch
      %188 = sbr.rel (0) target = $region37
    $region36: #{tpu_custom_call.1} parent=1 // pred_region
      %190 = vsyncadd [#allocation9], 0
      %s192 = sshll.u32 [#allocation8], 4
      %s193 = int_to_ptr.vmem [resolvable:$true] %s192
      %s194 = sshll.u32 %s6, 4
      %s195 = int_to_ptr.hbm [resolvable:$true] %s194
      %197 = dma.vmem_to_hbm [thread:$0]  %s193, 16, %s195, [#allocation9]
    $region37: #{tpu_custom_call.1} parent=1 // pred_fallthru
      _
    // Predicated region
    $region38: #{tpu_custom_call.1} parent=1 // pred_check
      _
    $region39: #{tpu_custom_call.1} parent=1 // pred_check_branch
      %199 = sbr.rel (0) target = $region41
    $region40: #{tpu_custom_call.1} parent=1 // pred_region
      %201 = dma.done [#allocation4], 128
    $region41: #{tpu_custom_call.1} parent=1 // pred_fallthru
      _
    // Predicated region
    $region42: #{tpu_custom_call.1} parent=1 // pred_check
      _
    $region43: #{tpu_custom_call.1} parent=1 // pred_check_branch
      %203 = sbr.rel (0) target = $region45
    $region44: #{tpu_custom_call.1} parent=1 // pred_region
      %205 = dma.done [#allocation9], 16
    $region45: #{tpu_custom_call.1} parent=1 // pred_fallthru
      _
    %206 = vsyncpa [#allocation3], 1
    %207 = vsyncpa [#allocation6], 1
    %208 = vsyncpa [#allocation4], 1
    %209 = vsyncpa [#allocation9], 1

</llo_original>
